<compile_context>
chip_gen: v7x
topology: tpu7x:2x2x1
jax: 0.10.0
libtpu: 0.0.40
codegen_flags: <defaults>
</compile_context>

<pallas_src>
import jax
import jax.numpy as jnp
from jax.experimental import pallas as pl
from jax.experimental.pallas import tpu as pltpu


_LANE = 128
_BYTES_TARGET = 8 << 20    # ~8 MiB of image data per block (review: 4-8 MiB)
_MIN_GRID_STEPS = 4        # keep >=4 grid steps so both v7x TensorCores work
_VMEM_CAP = 48 << 20       # never request more scoped VMEM than this (v7x: 64 MiB/TC)


# ---------------------------------------------------------------------------
# Kernel body: one lane-dense tile of the (C', HW') plane.
# ---------------------------------------------------------------------------
def _inject_noise_kernel(img_ref, w_ref, noise_ref, out_ref):
    # img_ref / out_ref : (tc, ts)  lane-dense image/output tile
    # w_ref             : (tc, 1)   per-channel weight (general path)
    #                     (tc, ts)  lane-expanded weight (small-HW folded path)
    # noise_ref         : (1, ts)   shared noise row (broadcast over sublanes)
    #
    # Native-dtype compute (no forced f32 upcast): exact for f32, and keeps
    # vreg pressure low for bf16 tiles on v6e/v7x.
    out_ref[...] = (img_ref[...] + w_ref[...] * noise_ref[...]).astype(out_ref.dtype)


# ---------------------------------------------------------------------------
# Tile-size helpers (trace-time Python only).
# ---------------------------------------------------------------------------
def _largest_divisor_multiple(dim: int, granule: int, cap: int) -> int:
    """Largest t with t % granule == 0, dim % t == 0, t <= min(cap, dim); 0 if none."""
    best = 0
    cap = min(cap, dim)
    t = granule
    while t <= cap:
        if dim % t == 0:
            best = t
        t += granule
    return best


def _pick_lane_tile(hw: int, tc: int, itemsize: int, n_outer: int) -> int:
    """Byte-budgeted lane tile: a multiple of 128 dividing hw, ~_BYTES_TARGET of image."""
    cap = max(_LANE, (_BYTES_TARGET // max(1, tc * itemsize)) // _LANE * _LANE)
    ts = _largest_divisor_multiple(hw, _LANE, cap)
    # Keep enough grid steps for megacore sharding before giving up lane width.
    while ts > _LANE and n_outer * (hw // ts) < _MIN_GRID_STEPS:
        smaller = _largest_divisor_multiple(hw, _LANE, ts - _LANE)
        if smaller <= 0:
            break
        ts = smaller
    return ts


# ---------------------------------------------------------------------------
# pallas_call on the lane-dense 3-D views.
# ---------------------------------------------------------------------------
def _inject_noise_3d(img3, w3, nse3, out_dtype):
    """img3: (N, Cr, L); w3: (1, Cr, 1|L); nse3: (N, 1, L).  L % 128 == 0."""
    N, Cr, L = img3.shape
    w_expanded = w3.shape[-1] != 1

    itemsize = jnp.dtype(img3.dtype).itemsize
    sublane = {4: 8, 2: 16, 1: 32}.get(itemsize, 8)

    # Channel (sublane) tile: weight is fully resident whenever Cr is small
    # (always true for StyleGAN); otherwise take a sublane-multiple divisor.
    if Cr <= 512:
        tc = Cr
    else:
        tc = _largest_divisor_multiple(Cr, sublane, 512) or Cr
    n_c = Cr // tc

    ts = _pick_lane_tile(L, tc, itemsize, N * n_c)
    n_s = L // ts
    grid = (N, n_s, n_c)  # channel innermost: the shared noise row is never re-DMA'd

    # Generation-aware scoped-VMEM request: double-buffered working set + margin,
    # capped well below v7x's 64 MiB/TC physical VMEM.
    w_lane = ts if w_expanded else 1
    working = 2 * (
        tc * ts * itemsize                                # image in
        + tc * ts * jnp.dtype(out_dtype).itemsize         # output
        + tc * w_lane * jnp.dtype(w3.dtype).itemsize      # weight
        + ts * jnp.dtype(nse3.dtype).itemsize             # noise row
    )
    vmem_limit = int(min(max(working + (4 << 20), 16 << 20), _VMEM_CAP))

    if w_expanded:
        w_spec = pl.BlockSpec((pl.Squeezed(), tc, ts), lambda n, s, c: (0, c, s))
    else:
        # Constant block index -> fetched once, never re-DMA'd per grid step.
        w_spec = pl.BlockSpec((pl.Squeezed(), tc, 1), lambda n, s, c: (0, c, 0))

    return pl.pallas_call(
        _inject_noise_kernel,
        out_shape=jax.ShapeDtypeStruct((N, Cr, L), out_dtype),
        grid_spec=pltpu.PrefetchScalarGridSpec(
            num_scalar_prefetch=0,
            grid=grid,
            in_specs=[
                pl.BlockSpec((pl.Squeezed(), tc, ts), lambda n, s, c: (n, c, s)),
                w_spec,
                pl.BlockSpec((pl.Squeezed(), 1, ts), lambda n, s, c: (n, 0, s)),
            ],
            out_specs=pl.BlockSpec((pl.Squeezed(), tc, ts), lambda n, s, c: (n, c, s)),
        ),
        compiler_params=pltpu.CompilerParams(
            dimension_semantics=("parallel", "parallel", "parallel"),
            vmem_limit_bytes=vmem_limit,
        ),
        # TODO(synk): add input_output_aliases={0: 0} when the caller can donate
        # the image buffer (halves peak HBM footprint; traffic is unchanged).
    )(img3, w3, nse3)


# ---------------------------------------------------------------------------
# Public wrapper: InjectNoise.forward
# ---------------------------------------------------------------------------
def inject_noise(image, weight, noise):
    """image: (N, C, H, W); weight: (1, C, 1, 1); noise: (N, 1, H, W)."""
    N, C, H, W = image.shape
    assert weight.shape == (1, C, 1, 1)
    assert noise.shape == (N, 1, H, W)
    HW = H * W
    out_dtype = jnp.result_type(image.dtype, weight.dtype, noise.dtype)

    # ---- Small feature maps (4x4 / 8x8 StyleGAN layers): fold channels into
    # the lane axis so stores stay full-width (no masked vst on sub-128 lanes).
    fold = 1
    if HW < _LANE and _LANE % HW == 0:
        g = _LANE // HW
        if C % g == 0:
            fold = g

    Cr = C // fold
    L = fold * HW
    img3 = image.reshape(N, Cr, L)
    nse3 = noise.reshape(N, 1, HW)
    if fold > 1:
        # Per-row lane layout is [ch0 x HW | ch1 x HW | ...]; expand the tiny
        # weight/noise arrays to match (cheap wrapper-side glue).
        w3 = jnp.repeat(weight.reshape(C), HW).reshape(1, Cr, L)
        nse3 = jnp.tile(nse3, (1, 1, fold))
    else:
        w3 = weight.reshape(1, C, 1)

    # ---- Pad the lane axis to a multiple of 128 if needed (rare for
    # power-of-two StyleGAN maps); padded lanes are sliced off afterwards.
    Lp = -(-L // _LANE) * _LANE
    if Lp != L:
        img3 = jnp.pad(img3, ((0, 0), (0, 0), (0, Lp - L)))
        nse3 = jnp.pad(nse3, ((0, 0), (0, 0), (0, Lp - L)))
        if w3.shape[-1] != 1:
            w3 = jnp.pad(w3, ((0, 0), (0, 0), (0, Lp - L)))

    out3 = _inject_noise_3d(img3, w3, nse3, out_dtype)

    if Lp != L:
        out3 = out3[:, :, :L]
    return out3.reshape(N, C, H, W)


# ---------------------------------------------------------------------------
# Self-test
# ---------------------------------------------------------------------------
if __name__ == "__main__":
    key = jax.random.PRNGKey(0)
    k_img, k_w, k_noise = jax.random.split(key, 3)

    # Main test: batch=2, channels=4, spatial=16x16 (general lane-dense path).
    N, C, H, W = 2, 4, 16, 16
    image = jax.random.normal(k_img, (N, C, H, W), dtype=jnp.float32)
    # Mirrors torch.randn(channels)[None, :, None, None] parameter init.
    weight = jax.random.normal(k_w, (C,), dtype=jnp.float32)[None, :, None, None]
    # Noise ~ N(0,1), shape (N, 1, H, W) — the module draws this each forward.
    noise = jax.random.normal(k_noise, (N, 1, H, W), dtype=jnp.float32)

    out = jax.block_until_ready(inject_noise(image, weight, noise))
    ref = image + weight * noise
    assert out.shape == (N, C, H, W)
    assert jnp.allclose(out, ref, atol=1e-6, rtol=1e-6)

    # Secondary test: 4x4 feature map exercises the channel-folding path.
    k2a, k2b, k2c = jax.random.split(jax.random.PRNGKey(1), 3)
    N2, C2, H2, W2 = 2, 8, 4, 4
    image2 = jax.random.normal(k2a, (N2, C2, H2, W2), dtype=jnp.float32)
    weight2 = jax.random.normal(k2b, (C2,), dtype=jnp.float32)[None, :, None, None]
    noise2 = jax.random.normal(k2c, (N2, 1, H2, W2), dtype=jnp.float32)
    out2 = jax.block_until_ready(inject_noise(image2, weight2, noise2))
    assert jnp.allclose(out2, image2 + weight2 * noise2, atol=1e-6, rtol=1e-6)

    print("KERNEL_OK")
</pallas_src>

<mosaic_0001>
module attributes {stable_mosaic.version = 11 : i64} {
  func.func @_inject_noise_kernel(%arg0: i32, %arg1: i32, %arg2: i32, %arg3: memref<1x4x128xf32, #tpu.memory_space<vmem>>, %arg4: memref<1x4x1xf32, #tpu.memory_space<vmem>>, %arg5: memref<1x1x128xf32, #tpu.memory_space<vmem>>, %arg6: memref<1x4x128xf32, #tpu.memory_space<vmem>>) attributes {dimension_semantics = [#tpu.dimension_semantics<parallel>, #tpu.dimension_semantics<parallel>, #tpu.dimension_semantics<parallel>], iteration_bounds = array<i64: 2, 2, 1>, scalar_prefetch = 0 : i64, scratch_operands = 0 : i64, tpu.core_type = #tpu.core_type<tc>, window_params = [{transform_indices = @transform_0, window_bounds = array<i64: 1, 4, 128>}, {transform_indices = @transform_1, window_bounds = array<i64: 1, 4, 1>}, {transform_indices = @transform_2, window_bounds = array<i64: 1, 1, 128>}, {transform_indices = @transform_3, window_bounds = array<i64: 1, 4, 128>}]} {
    %c0 = arith.constant 0 : index
    %c0_0 = arith.constant 0 : index
    %c0_1 = arith.constant 0 : index
    %0 = vector.load %arg3[%c0, %c0_0, %c0_1] : memref<1x4x128xf32, #tpu.memory_space<vmem>>, vector<1x4x128xf32>
    %1 = vector.shape_cast %0 : vector<1x4x128xf32> to vector<4x128xf32>
    %c0_2 = arith.constant 0 : index
    %c0_3 = arith.constant 0 : index
    %c0_4 = arith.constant 0 : index
    %2 = vector.load %arg4[%c0_2, %c0_3, %c0_4] : memref<1x4x1xf32, #tpu.memory_space<vmem>>, vector<1x4x1xf32>
    %3 = vector.shape_cast %2 : vector<1x4x1xf32> to vector<4x1xf32>
    %c0_5 = arith.constant 0 : index
    %c0_6 = arith.constant 0 : index
    %c0_7 = arith.constant 0 : index
    %4 = vector.load %arg5[%c0_5, %c0_6, %c0_7] : memref<1x1x128xf32, #tpu.memory_space<vmem>>, vector<1x1x128xf32>
    %5 = vector.shape_cast %4 : vector<1x1x128xf32> to vector<1x128xf32>
    %6 = vector.broadcast %3 : vector<4x1xf32> to vector<4x128xf32>
    %7 = vector.broadcast %5 : vector<1x128xf32> to vector<4x128xf32>
    %8 = arith.mulf %6, %7 : vector<4x128xf32>
    %9 = arith.addf %1, %8 : vector<4x128xf32>
    %c0_8 = arith.constant 0 : index
    %c0_9 = arith.constant 0 : index
    %c0_10 = arith.constant 0 : index
    %10 = vector.load %arg6[%c0_8, %c0_9, %c0_10] : memref<1x4x128xf32, #tpu.memory_space<vmem>>, vector<1x4x128xf32>
    %11 = vector.shape_cast %10 : vector<1x4x128xf32> to vector<4x128xf32>
    %12 = vector.shape_cast %9 : vector<4x128xf32> to vector<1x4x128xf32>
    tpu.vector_store %arg6[%c0_8, %c0_9, %c0_10], %12 {strides = array<i32>} : memref<1x4x128xf32, #tpu.memory_space<vmem>>, vector<1x4x128xf32>,
    return
  }
  func.func @transform_0(%arg0: i32, %arg1: i32, %arg2: i32) -> (i32, i32, i32) {
    %c0_i32 = arith.constant 0 : i32
    return %arg0, %arg2, %arg1 : i32, i32, i32
  }
  func.func @transform_1(%arg0: i32, %arg1: i32, %arg2: i32) -> (i32, i32, i32) {
    %c0_i32 = arith.constant 0 : i32
    %c0_i32_0 = arith.constant 0 : i32
    %c0_i32_1 = arith.constant 0 : i32
    return %c0_i32, %arg2, %c0_i32_0 : i32, i32, i32
  }
  func.func @transform_2(%arg0: i32, %arg1: i32, %arg2: i32) -> (i32, i32, i32) {
    %c0_i32 = arith.constant 0 : i32
    %c0_i32_0 = arith.constant 0 : i32
    return %arg0, %c0_i32, %arg1 : i32, i32, i32
  }
  func.func @transform_3(%arg0: i32, %arg1: i32, %arg2: i32) -> (i32, i32, i32) {
    %c0_i32 = arith.constant 0 : i32
    return %arg0, %arg2, %arg1 : i32, i32, i32
  }
}

</mosaic_0001>

<llo_original>
// kernel: tpu_custom_call.1
$region0: #{tpu_custom_call.1}
  #allocation0 [shape = 'u32[]', space=smem, size = 0x4, offset = 0x4, fixed_abs, tag = 'smem constant byte address 0x4 - core index']
  #allocation1 [shape = 'u32[144,128]{1,0:T(1,128)}', space=vmem, size = 0x12000, scoped, tag = 'internal scratch']
  %s0 = inlined_call_operand.hbm [shape: f32[2,4,256], index: 0, kind: input, shape index: {}]
  %s1 = inlined_call_operand.vmem [shape: f32[1,4,1], index: 1, kind: input, shape index: {}]
  %s2 = inlined_call_operand.vmem [shape: f32[2,1,256], index: 2, kind: input, shape index: {}]
  %s3 = inlined_call_operand.hbm [shape: f32[2,4,256], index: 3, kind: output, shape index: {}]
  %s4 = sld [smem:[#allocation0]]
  $region49: #{tpu_custom_call.1} parent=0
    _
  %s6 = ssub.s32 1, %s4
  %s7 = scalar_select 0, %s6, %s4
  $region1: #{tpu_custom_call.1} parent=0
    #allocation2 [shape = 'u8[4096]{0}', space=vmem, size = 0x1000, scoped, tag = 'input window, operand 0']
    #allocation3 [shape = 's32[2]{0}', space=sflag, size = 0x8, scoped, tag = 'scoped memory for tpu_custom_call.1']
    #allocation4 [shape = 's32[2]{0}', space=sflag, size = 0x8, scoped, tag = 'scoped memory for tpu_custom_call.1']
    #allocation5 [shape = 'u8[4096]{0}', space=vmem, size = 0x1000, scoped, tag = 'output window, operand 0']
    %8 = vsyncpa [#allocation3], 0
    %s9 = scalar_lea.sflag [#allocation3], 1
    %10 = vsyncpa %s9, 0
    %11 = vsyncpa [#allocation4], 0
    %s12 = scalar_lea.sflag [#allocation4], 1
    %13 = vsyncpa %s12, 0
    loop: start=0, step=1, limit=6
    $region2: #{tpu_custom_call.1} parent=1 // loop_pre_header
      _
    $region3: #{tpu_custom_call.1} parent=1 // loop_header
      %s15 = sphi 0, %s19
      %p16 = scmp.ge.s32.totalorder %s15, 6
      %s22 = sphi 0, %s41
      %s23 = sphi 0, %s37
      %s24 = sphi 0, %s33
      %s25 = sphi 0, %s22
      %s26 = sphi 0, %s23
      %s27 = sphi 0, %s24
      %s28 = sphi 0, %s25
      %s29 = sphi 0, %s26
      %s30 = sphi 0, %s27
      %s48 = sphi 0, %s50
      %s51 = sphi 0, %s48
      %s52 = sphi 0, %s51
      %s68 = sphi 0, %s52
      %s74 = sphi 0, %s76
      %s77 = sphi 0, %s74
      %s78 = sphi 0, %s77
      %s94 = sphi 0, %s78
      %s102 = sphi 0, %s104
      %s105 = sphi 0, %s102
      %s106 = sphi 0, %s105
      %s122 = sphi 0, %s106
      %s132 = sphi 0, %s134
      %s135 = sphi 0, %s132
      %s136 = sphi 0, %s135
      %s152 = sphi 0, %s136
    $region4: #{tpu_custom_call.1} parent=1 // loop_header_branch
      %18 = sbr.rel (%p16) target = $region8
    $region5: #{tpu_custom_call.1} parent=1 // loop_body
      %s20 = ssub.s32 %s15, 1
      %s21 = ssub.s32 %s15, 2
      %s31 = sadd.s32 1, %s24
      %p32 = scmp.ge.s32.totalorder %s31, 1
      %s33 = scalar_select %p32, 0, %s31
      %s34 = sadd.s32 1, %s23
      %s35 = scalar_select %p32, %s34, %s23
      %p36 = scmp.ge.s32.totalorder %s35, 2
      %s37 = scalar_select %p36, 0, %s35
      %s38 = sadd.s32 1, %s22
      %s39 = scalar_select %p36, %s38, %s22
      %p40 = scmp.ge.s32.totalorder %s39, 2
      %s41 = scalar_select %p40, 0, %s39
      %s42 = ssub.s32 %s22, %s41
      %s43 = ssub.s32 %s24, %s33
      %s44 = sor.u32 %s42, %s43
      %s45 = ssub.s32 %s23, %s37
      %s46 = sor.u32 %s44, %s45
      %p47 = scmp.eq.s32.totalorder %s46, 0
      %s49 = sadd.s32 %s48, 1
      %s50 = scalar_select %p47, %s48, %s49
      %p53 = pneg %p47
      %p54 = scmp.eq.s32.totalorder %s15, 3
      %p55 = por %p53, %p54
      %p56 = scmp.ne.s32.totalorder %s48, %s51
      %p57 = scmp.eq.s32.totalorder %s15, 0
      %p58 = por %p56, %p57
      %p59 = scmp.ne.s32.totalorder %s48, %s51
      %p60 = scmp.eq.s32.totalorder %s20, 3
      %p61 = por %p59, %p60
      %p62 = scmp.ne.s32.totalorder %s51, %s52
      %p63 = scmp.eq.s32.totalorder %s20, 0
      %p64 = por %p62, %p63
      %p65 = scmp.ne.s32.totalorder %s51, %s52
      %p66 = scmp.eq.s32.totalorder %s21, 3
      %p67 = por %p65, %p66
      %p69 = scmp.ne.s32.totalorder %s52, %s68
      %p70 = scmp.eq.s32.totalorder %s21, 0
      %p71 = por %p69, %p70
      %s72 = ssub.s32 %s24, %s33
      %p73 = scmp.eq.s32.totalorder %s72, 0
      %s75 = sadd.s32 %s74, 1
      %s76 = scalar_select %p73, %s74, %s75
      %p79 = pneg %p73
      %p80 = scmp.eq.s32.totalorder %s15, 3
      %p81 = por %p79, %p80
      %p82 = scmp.ne.s32.totalorder %s74, %s77
      %p83 = scmp.eq.s32.totalorder %s15, 0
      %p84 = por %p82, %p83
      %p85 = scmp.ne.s32.totalorder %s74, %s77
      %p86 = scmp.eq.s32.totalorder %s20, 3
      %p87 = por %p85, %p86
      %p88 = scmp.ne.s32.totalorder %s77, %s78
      %p89 = scmp.eq.s32.totalorder %s20, 0
      %p90 = por %p88, %p89
      %p91 = scmp.ne.s32.totalorder %s77, %s78
      %p92 = scmp.eq.s32.totalorder %s21, 3
      %p93 = por %p91, %p92
      %p95 = scmp.ne.s32.totalorder %s78, %s94
      %p96 = scmp.eq.s32.totalorder %s21, 0
      %p97 = por %p95, %p96
      %s98 = ssub.s32 %s22, %s41
      %s99 = ssub.s32 %s23, %s37
      %s100 = sor.u32 %s98, %s99
      %p101 = scmp.eq.s32.totalorder %s100, 0
      %s103 = sadd.s32 %s102, 1
      %s104 = scalar_select %p101, %s102, %s103
      %p107 = pneg %p101
      %p108 = scmp.eq.s32.totalorder %s15, 3
      %p109 = por %p107, %p108
      %p110 = scmp.ne.s32.totalorder %s102, %s105
      %p111 = scmp.eq.s32.totalorder %s15, 0
      %p112 = por %p110, %p111
      %p113 = scmp.ne.s32.totalorder %s102, %s105
      %p114 = scmp.eq.s32.totalorder %s20, 3
      %p115 = por %p113, %p114
      %p116 = scmp.ne.s32.totalorder %s105, %s106
      %p117 = scmp.eq.s32.totalorder %s20, 0
      %p118 = por %p116, %p117
      %p119 = scmp.ne.s32.totalorder %s105, %s106
      %p120 = scmp.eq.s32.totalorder %s21, 3
      %p121 = por %p119, %p120
      %p123 = scmp.ne.s32.totalorder %s106, %s122
      %p124 = scmp.eq.s32.totalorder %s21, 0
      %p125 = por %p123, %p124
      %s126 = ssub.s32 %s22, %s41
      %s127 = ssub.s32 %s24, %s33
      %s128 = sor.u32 %s126, %s127
      %s129 = ssub.s32 %s23, %s37
      %s130 = sor.u32 %s128, %s129
      %p131 = scmp.eq.s32.totalorder %s130, 0
      %s133 = sadd.s32 %s132, 1
      %s134 = scalar_select %p131, %s132, %s133
      %p137 = pneg %p131
      %p138 = scmp.eq.s32.totalorder %s15, 3
      %p139 = por %p137, %p138
      %p140 = scmp.ne.s32.totalorder %s132, %s135
      %p141 = scmp.eq.s32.totalorder %s15, 0
      %p142 = por %p140, %p141
      %p143 = scmp.ne.s32.totalorder %s132, %s135
      %p144 = scmp.eq.s32.totalorder %s20, 3
      %p145 = por %p143, %p144
      %p146 = scmp.ne.s32.totalorder %s135, %s136
      %p147 = scmp.eq.s32.totalorder %s20, 0
      %p148 = por %p146, %p147
      %p149 = scmp.ne.s32.totalorder %s135, %s136
      %p150 = scmp.eq.s32.totalorder %s21, 3
      %p151 = por %p149, %p150
      %p153 = scmp.ne.s32.totalorder %s136, %s152
      %p154 = scmp.eq.s32.totalorder %s21, 0
      %p155 = por %p153, %p154
      %p156 = scmp.le.s32.totalorder 1, %s15
      %p157 = scmp.lt.s32.totalorder %s15, 5
      %p158 = pnand %p156, %p157
      %p159 = pneg %p158
      // Predicated region
      $region9: #{tpu_custom_call.1} parent=5 // pred_check
        _
      $region10: #{tpu_custom_call.1} parent=5 // pred_check_branch
        %161 = sbr.rel (%p158) target = $region12
      $region11: #{tpu_custom_call.1} parent=5 // pred_region
        %s162 = ssub.s32 %s15, 1
        // Predicated region
        $region13: #{tpu_custom_call.1} parent=11 // pred_check
          %p163 = pneg %p90
        $region14: #{tpu_custom_call.1} parent=11 // pred_check_branch
          %165 = sbr.rel (%p163) target = $region16
        $region15: #{tpu_custom_call.1} parent=11 // pred_region
          %p166 = scmp.lt.s32.totalorder %s27, 0
          %s167 = scalar_select %p166, %s27, 0
          %s168 = smul.addr %s167, 4
          %s169 = scalar_lea.vmem %s1, %s168
        $region16: #{tpu_custom_call.1} parent=11 // pred_fallthru
          _
      $region12: #{tpu_custom_call.1} parent=5 // pred_fallthru
        _
      %p170 = scmp.lt.s32.totalorder %s15, 4
      // Predicated region
      $region17: #{tpu_custom_call.1} parent=5 // pred_check
        %p171 = pneg %p170
      $region18: #{tpu_custom_call.1} parent=5 // pred_check_branch
        %173 = sbr.rel (%p171) target = $region20
      $region19: #{tpu_custom_call.1} parent=5 // pred_region
        // Predicated region
        $region21: #{tpu_custom_call.1} parent=19 // pred_check
          %p174 = pneg %p58
        $region22: #{tpu_custom_call.1} parent=19 // pred_check_branch
          %176 = sbr.rel (%p174) target = $region24
        $region23: #{tpu_custom_call.1} parent=19 // pred_region
          %s177 = sand.u32 %s48, 1
          %s178 = scalar_lea.sflag [#allocation3], %s177
          %s179 = sand.u32 %s48, 1
          %s180 = smul.addr %s179, 4
          %s181 = scalar_lea.vmem [#allocation2], %s180
          %s183 = ssub.s32 64, 64
          %184 = vsyncadd %s178, %s183
          %s185 = smul.addr %s24, 2
          %s186 = sadd.s32 %s23, %s185
          %s187 = smul.addr %s22, 2
          %s188 = sadd.s32 %s186, %s187
          %s189 = smul.addr %s188, 64
          %s190 = scalar_lea.hbm %s0, %s189
          %s192 = sshll.u32 %s181, 4
          %s193 = int_to_ptr.vmem [resolvable:$true] %s192
          %195 = dma.hbm_to_vmem [thread:$0]  %s190, 64, %s193, %s178
        $region24: #{tpu_custom_call.1} parent=19 // pred_fallthru
          _
        // Predicated region
        $region25: #{tpu_custom_call.1} parent=19 // pred_check
          %p196 = pneg %p112
        $region26: #{tpu_custom_call.1} parent=19 // pred_check_branch
          %198 = sbr.rel (%p196) target = $region28
        $region27: #{tpu_custom_call.1} parent=19 // pred_region
          %p199 = scmp.lt.s32.totalorder %s22, 1
          %s200 = scalar_select %p199, %s22, 1
          %p201 = scmp.lt.s32.totalorder %s23, 1
          %s202 = scalar_select %p201, %s23, 1
          %s203 = smul.addr %s200, 2
          %s204 = sadd.s32 %s202, %s203
          %s205 = scalar_lea.vmem %s2, %s204
        $region28: #{tpu_custom_call.1} parent=19 // pred_fallthru
          _
      $region20: #{tpu_custom_call.1} parent=5 // pred_fallthru
        _
      %p206 = scmp.le.s32.totalorder 1, %s15
      %p207 = scmp.lt.s32.totalorder %s15, 5
      %p208 = pnand %p206, %p207
      %p209 = pneg %p208
      // Predicated region
      $region29: #{tpu_custom_call.1} parent=5 // pred_check
        _
      $region30: #{tpu_custom_call.1} parent=5 // pred_check_branch
        %211 = sbr.rel (%p208) target = $region32
      $region31: #{tpu_custom_call.1} parent=5 // pred_region
        %s212 = ssub.s32 %s15, 1
        %s213 = sand.u32 %s51, 1
        %s214 = scalar_lea.sflag [#allocation3], %s213
        %s215 = sand.u32 %s51, 1
        %s216 = smul.addr %s215, 4
        %s217 = scalar_lea.vmem [#allocation2], %s216
        // Predicated region
        $region33: #{tpu_custom_call.1} parent=31 // pred_check
          %p218 = pneg %p64
        $region34: #{tpu_custom_call.1} parent=31 // pred_check_branch
          %220 = sbr.rel (%p218) target = $region36
        $region35: #{tpu_custom_call.1} parent=31 // pred_region
          %221 = dma.done %s214, 64
        $region36: #{tpu_custom_call.1} parent=31 // pred_fallthru
          _
        %s222 = sand.u32 %s51, 1
        %s223 = scalar_lea.sflag [#allocation3], %s222
        %s224 = sand.u32 %s51, 1
        %s225 = smul.addr %s224, 4
        %s226 = scalar_lea.vmem [#allocation2], %s225
        %p227 = pneg %p64
        %p228 = pneg %p61
        %p229 = scmp.lt.s32.totalorder %s27, 0
        %s230 = scalar_select %p229, %s27, 0
        %s231 = smul.addr %s230, 4
        %s232 = scalar_lea.vmem %s1, %s231
        %p233 = pneg %p90
        %p234 = pneg %p87
        %p235 = scmp.lt.s32.totalorder %s25, 1
        %s236 = scalar_select %p235, %s25, 1
        %p237 = scmp.lt.s32.totalorder %s26, 1
        %s238 = scalar_select %p237, %s26, 1
        %s239 = smul.addr %s236, 2
        %s240 = sadd.s32 %s238, %s239
        %s241 = scalar_lea.vmem %s2, %s240
        %p242 = pneg %p118
        %p243 = pneg %p115
        %p244 = pneg %p148
        %p245 = pneg %p145
        %s246 = sand.u32 %s135, 1
        %s247 = scalar_lea.sflag [#allocation4], %s246
        %s248 = sand.u32 %s135, 1
        %s249 = smul.addr %s248, 4
        %s250 = scalar_lea.vmem [#allocation5], %s249
        %p251 = scmp.lt.s32.totalorder %s27, 0
        %s252 = scalar_select %p251, %s27, 0
        %s253 = smul.addr %s252, 4
        %s254 = scalar_lea.vmem %s1, %s253
        %p255 = scmp.lt.s32.totalorder %s25, 1
        %s256 = scalar_select %p255, %s25, 1
        %p257 = scmp.lt.s32.totalorder %s26, 1
        %s258 = scalar_select %p257, %s26, 1
        %s259 = smul.addr %s256, 2
        %s260 = sadd.s32 %s258, %s259
        %s261 = scalar_lea.vmem %s2, %s260
        %v262 = vld [vmem:[%s217] sm:$0xf]
        %v263 = vld [vmem:[%s254] sm:$0xf]
        %v264 = vld [vmem:[%s261] sm:$0x1]
        %266 = vset.pattern.permute.xlu0 0
        %267 = vperm.xlu0 %266, %v263
        %v268 = vpop.permute.xlu0 %267
        %v271 = vlaneseq
        %v272 = vshrl.u32 %v271, 7
        %v273 = vsub.s32 0, %v272
        %v274 = vrot.slane %v264, %v273
        %v276 = vmul.f32 %v268, %v274
        %v277 = vadd.f32 %v262, %v276
        %278 = vst [vmem:[%s250] sm:$0xf] %v277
        %s279 = sand.u32 %s135, 1
        %s280 = scalar_lea.sflag [#allocation4], %s279
        %s281 = sand.u32 %s135, 1
        %s282 = smul.addr %s281, 4
        %s283 = scalar_lea.vmem [#allocation5], %s282
        // Predicated region
        $region37: #{tpu_custom_call.1} parent=31 // pred_check
          %p284 = pneg %p145
        $region38: #{tpu_custom_call.1} parent=31 // pred_check_branch
          %286 = sbr.rel (%p284) target = $region40
        $region39: #{tpu_custom_call.1} parent=31 // pred_region
          %s288 = ssub.s32 64, 64
          %289 = vsyncadd %s280, %s288
          %s290 = smul.addr %s27, 2
          %s291 = sadd.s32 %s26, %s290
          %s292 = smul.addr %s25, 2
          %s293 = sadd.s32 %s291, %s292
          %s294 = smul.addr %s293, 64
          %s295 = scalar_lea.hbm %s3, %s294
          %s297 = sshll.u32 %s283, 4
          %s298 = int_to_ptr.vmem [resolvable:$true] %s297
          %300 = dma.vmem_to_hbm [thread:$0]  %s298, 64, %s295, %s280
        $region40: #{tpu_custom_call.1} parent=31 // pred_fallthru
          _
      $region32: #{tpu_custom_call.1} parent=5 // pred_fallthru
        _
      %p301 = scmp.le.s32.totalorder 2, %s15
      // Predicated region
      $region41: #{tpu_custom_call.1} parent=5 // pred_check
        %p302 = pneg %p301
      $region42: #{tpu_custom_call.1} parent=5 // pred_check_branch
        %304 = sbr.rel (%p302) target = $region44
      $region43: #{tpu_custom_call.1} parent=5 // pred_region
        %s305 = ssub.s32 %s15, 2
        // Predicated region
        $region45: #{tpu_custom_call.1} parent=43 // pred_check
          %p306 = pneg %p151
        $region46: #{tpu_custom_call.1} parent=43 // pred_check_branch
          %308 = sbr.rel (%p306) target = $region48
        $region47: #{tpu_custom_call.1} parent=43 // pred_region
          %s309 = sand.u32 %s136, 1
          %s310 = scalar_lea.sflag [#allocation4], %s309
          %s311 = sand.u32 %s136, 1
          %s312 = smul.addr %s311, 4
          %s313 = scalar_lea.vmem [#allocation5], %s312
          %314 = dma.done %s310, 64
        $region48: #{tpu_custom_call.1} parent=43 // pred_fallthru
          _
      $region44: #{tpu_custom_call.1} parent=5 // pred_fallthru
        _
    $region6: #{tpu_custom_call.1} parent=1 // loop_footer
      %s19 = sadd.s32 1, %s15
    $region7: #{tpu_custom_call.1} parent=1 // loop_footer_branch
      %14 = sbr.rel target = $region3
    $region8: #{tpu_custom_call.1} parent=1 // loop_exit
      _
    %315 = vsyncpa [#allocation3], 1
    %s316 = scalar_lea.sflag [#allocation3], 1
    %317 = vsyncpa %s316, 1
    %318 = vsyncpa [#allocation4], 1
    %s319 = scalar_lea.sflag [#allocation4], 1
    %320 = vsyncpa %s319, 1

</llo_original>
